<compile_context>
chip_gen: v5e
topology: v5e:2x2
jax: 0.10.0
libtpu: 0.0.40
codegen_flags: <defaults>
</compile_context>

<pallas_src>
import functools
import numpy as np

import jax
import jax.numpy as jnp
from jax import lax
from jax.experimental import pallas as pl
from jax.experimental.pallas import tpu as pltpu

_EPS = 1e-5


# --------------------------------------------------------------------------- #
# Pallas kernel: split-attention forward for one batch tile.
# --------------------------------------------------------------------------- #
def _split_attention_kernel(x_ref, wc_ref, s0_ref, t0_ref,
                            w1_ref, s1_ref, t1_ref,
                            w2_ref, b2_ref, out_ref,
                            *, radix, c_pad, l_out, b_tile):
    cr = radix * c_pad
    m = b_tile * l_out

    # fused im2col conv: one bf16 MXU matmul, f32 accumulation
    x2d = x_ref[...].reshape(m, x_ref.shape[-1])                  # (M, K*Cin)
    acc = jnp.dot(x2d, wc_ref[...], preferred_element_type=jnp.float32)

    # conv bias + BatchNorm1d(eval) folded into one affine, then ReLU (f32)
    y = jnp.maximum(acc * s0_ref[...] + t0_ref[...], 0.0)         # (M, radix*C_pad)
    y3 = y.reshape(b_tile, l_out, cr)

    # radix-split sum followed by AdaptiveAvgPool1d(1); the 1/L_out of the
    # mean is folded into s1 by the wrapper, so a plain sum suffices here.
    g = y3[:, :, 0:c_pad]
    for r in range(1, radix):
        g = g + y3[:, :, r * c_pad:(r + 1) * c_pad]
    gap = jnp.sum(g, axis=1)                                      # (b_tile, C_pad)

    # fc1 (grouped 1x1 conv as block-diag dense matmul) + bn1 + ReLU
    z = jnp.dot(gap.astype(w1_ref.dtype), w1_ref[...],
                preferred_element_type=jnp.float32)
    h = jnp.maximum(z * s1_ref[...] + t1_ref[...], 0.0)           # (b_tile, inter)

    # fc2 (columns pre-permuted so rSoftMax becomes contiguous radix slices)
    a = jnp.dot(h.astype(w2_ref.dtype), w2_ref[...],
                preferred_element_type=jnp.float32) + b2_ref[...]  # (b_tile, radix*C_pad)

    if radix > 1:
        # rSoftMax: softmax over radix, elementwise per channel lane (VPU-only)
        logits = [a[:, r * c_pad:(r + 1) * c_pad] for r in range(radix)]
        mx = logits[0]
        for r in range(1, radix):
            mx = jnp.maximum(mx, logits[r])
        exps = [jnp.exp(l - mx) for l in logits]
        den = exps[0]
        for r in range(1, radix):
            den = den + exps[r]
        inv_den = pl.reciprocal(den, approx=True)                 # EUP slot
        out = jnp.zeros((b_tile, l_out, c_pad), jnp.float32)
        for r in range(radix):
            att_r = (exps[r] * inv_den)[:, None, :]               # (b_tile, 1, C_pad)
            out = out + att_r * y3[:, :, r * c_pad:(r + 1) * c_pad]
    else:
        att = pl.reciprocal(1.0 + jnp.exp(-a), approx=True)[:, None, :]
        out = att * y3

    out_ref[...] = out.astype(out_ref.dtype)                      # lane-dense store


# --------------------------------------------------------------------------- #
# Wrapper: layout conversion, im2col, batch tiling, pallas_call plumbing.
# --------------------------------------------------------------------------- #
def split_attention_conv1d(x_ncl, kp, *, radix, channels, kernel_size,
                           stride, padding, dilation, b_tile=None):
    B, Cin, L = x_ncl.shape
    l_out = (L + 2 * padding - dilation * (kernel_size - 1) - 1) // stride + 1
    c_pad = kp["c_pad"]
    cr_pad = radix * c_pad
    inter = kp["w1_dense"].shape[1]
    kcin = kernel_size * Cin

    # NCL -> NLC (channels on lanes), pad length, build im2col slab in XLA.
    x_nlc = jnp.transpose(x_ncl, (0, 2, 1)).astype(jnp.float32)
    x_padded = jnp.pad(x_nlc, ((0, 0), (padding, padding), (0, 0)))
    cols = [x_padded[:, k * dilation:k * dilation + stride * (l_out - 1) + 1:stride, :]
            for k in range(kernel_size)]
    x_col = jnp.concatenate(cols, axis=-1).astype(jnp.bfloat16)   # (B, L_out, K*Cin)

    # Batch tile: fatten matmul M dim toward ~256 rows, keep >= 2 grid steps
    # when B >= 2 (both v7x TensorCores busy), and stay well inside VMEM.
    if b_tile is None:
        rows_target = max(1, (256 + l_out - 1) // l_out)
        b_tile = max(1, min(B // 2 if B >= 2 else 1, rows_target))
        per_b_bytes = l_out * (kcin * 2 * 2        # x tile, bf16, double-buffered
                               + c_pad * 4 * 2     # out tile, f32, double-buffered
                               + cr_pad * 4 * 2)   # y slab + attention temporaries
        while b_tile > 1 and b_tile * per_b_bytes > 24 * 1024 * 1024:
            b_tile -= 1
    b_extra = (-B) % b_tile
    if b_extra:
        x_col = jnp.pad(x_col, ((0, b_extra), (0, 0), (0, 0)))
    n_steps = (B + b_extra) // b_tile
    b_total = n_steps * b_tile

    # Fold AdaptiveAvgPool1d's 1/L_out into the fc1 BN scale (linear path).
    s1_eff = kp["s1"] * jnp.float32(1.0 / l_out)

    kernel = functools.partial(
        _split_attention_kernel,
        radix=radix, c_pad=c_pad, l_out=l_out, b_tile=b_tile)

    # Advisory cost hint for XLA's scheduler around the custom call.
    m_total = b_total * l_out
    cost = pl.CostEstimate(
        flops=int(2 * m_total * kcin * cr_pad
                  + 2 * b_total * (c_pad * inter + inter * cr_pad)
                  + 8 * m_total * cr_pad),
        transcendentals=int(b_total * cr_pad),
        bytes_accessed=int(x_col.size * 2 + m_total * c_pad * 4
                           + (kcin * cr_pad + c_pad * inter + inter * cr_pad) * 2
                           + 4 * cr_pad * 4 + 2 * inter * 4),
    )

    out_nlc = pl.pallas_call(
        kernel,
        out_shape=jax.ShapeDtypeStruct((b_total, l_out, c_pad), jnp.float32),
        grid=(n_steps,),
        in_specs=[
            pl.BlockSpec((b_tile, l_out, kcin), lambda b: (b, 0, 0)),
            pl.BlockSpec((kcin, cr_pad), lambda b: (0, 0)),
            pl.BlockSpec((1, cr_pad), lambda b: (0, 0)),
            pl.BlockSpec((1, cr_pad), lambda b: (0, 0)),
            pl.BlockSpec((c_pad, inter), lambda b: (0, 0)),
            pl.BlockSpec((1, inter), lambda b: (0, 0)),
            pl.BlockSpec((1, inter), lambda b: (0, 0)),
            pl.BlockSpec((inter, cr_pad), lambda b: (0, 0)),
            pl.BlockSpec((1, cr_pad), lambda b: (0, 0)),
        ],
        out_specs=pl.BlockSpec((b_tile, l_out, c_pad), lambda b: (b, 0, 0)),
        compiler_params=pltpu.CompilerParams(
            dimension_semantics=("parallel",),
            vmem_limit_bytes=48 * 1024 * 1024),
        cost_estimate=cost,
    )(x_col, kp["wconv_dense"], kp["s0"], kp["t0"],
      kp["w1_dense"], s1_eff, kp["t1"], kp["w2_perm"], kp["b2_perm"])

    out_nlc = out_nlc[:B, :, :channels]                           # drop padding
    return jnp.transpose(out_nlc, (0, 2, 1))                      # back to NCL


# --------------------------------------------------------------------------- #
# Deterministic parameter init (mirrors nn module __init__ shapes).
# --------------------------------------------------------------------------- #
def init_raw_params(key, in_channels, channels, kernel_size, groups, radix,
                    reduction_factor):
    inter = max(in_channels * radix // reduction_factor, 32)
    c_r = channels * radix
    g_tot = groups * radix
    ks = jax.random.split(key, 14)
    n = lambda k, shp, s=0.1: s * jax.random.normal(k, shp, jnp.float32)
    p = {
        "w_conv": n(ks[0], (c_r, in_channels // g_tot, kernel_size)),
        "b_conv": n(ks[1], (c_r,)),
        "gamma0": 1.0 + n(ks[2], (c_r,)),
        "beta0":  n(ks[3], (c_r,)),
        "mean0":  n(ks[4], (c_r,)),
        "var0":   jax.random.uniform(ks[5], (c_r,), jnp.float32, 0.5, 1.5),
        "w1":     n(ks[6], (inter, channels // groups, 1)),
        "b1":     n(ks[7], (inter,)),
        "gamma1": 1.0 + n(ks[8], (inter,)),
        "beta1":  n(ks[9], (inter,)),
        "mean1":  n(ks[10], (inter,)),
        "var1":   jax.random.uniform(ks[11], (inter,), jnp.float32, 0.5, 1.5),
        "w2":     n(ks[12], (c_r, inter // groups, 1)),
        "b2":     n(ks[13], (c_r,)),
    }
    return p, inter


def _expand_grouped(w, in_channels, groups):
    """(C_out, Cin/groups, K) -> dense (K, Cin, C_out) with zeros across groups."""
    w = np.asarray(w)
    c_out, cin_g, K = w.shape
    cout_g = c_out // groups
    dense = np.zeros((K, in_channels, c_out), np.float32)
    for g in range(groups):
        for co in range(cout_g):
            dense[:, g * cin_g:(g + 1) * cin_g, g * cout_g + co] = w[g * cout_g + co].T
    return dense


def prepare_kernel_params(raw, *, in_channels, channels, groups, radix, inter):
    c_r = channels * radix
    c_pad = ((channels + 127) // 128) * 128          # lane-dense channel padding
    cr_pad = radix * c_pad

    wconv_dense = _expand_grouped(raw["w_conv"], in_channels, groups * radix)
    K, Cin, _ = wconv_dense.shape
    wconv_flat = wconv_dense.reshape(K * Cin, c_r)   # im2col weight (K*Cin, C*r)

    w1_dense = _expand_grouped(raw["w1"], channels, groups)[0]   # (C, inter)
    w2_dense = _expand_grouped(raw["w2"], inter, groups)[0]      # (inter, C*r)

    # permute fc2 output columns into rSoftMax (radix, cardinality, cpc) order
    cpc = channels // groups
    perm = np.zeros(c_r, np.int32)
    for r in range(radix):
        for g in range(groups):
            for j in range(cpc):
                perm[r * channels + g * cpc + j] = g * radix * cpc + r * cpc + j
    w2_perm = w2_dense[:, perm]
    b2_perm = np.asarray(raw["b2"])[perm]

    s0 = np.asarray(raw["gamma0"]) / np.sqrt(np.asarray(raw["var0"]) + _EPS)
    t0 = np.asarray(raw["beta0"]) + (np.asarray(raw["b_conv"]) - np.asarray(raw["mean0"])) * s0
    s1 = np.asarray(raw["gamma1"]) / np.sqrt(np.asarray(raw["var1"]) + _EPS)
    t1 = np.asarray(raw["beta1"]) + (np.asarray(raw["b1"]) - np.asarray(raw["mean1"])) * s1

    # scatter real channels of each radix block into 128-lane-padded blocks
    def pad_cols(m_):
        out = np.zeros((m_.shape[0], cr_pad), np.float32)
        for r in range(radix):
            out[:, r * c_pad:r * c_pad + channels] = m_[:, r * channels:(r + 1) * channels]
        return out

    def pad_vec(v):
        out = np.zeros((cr_pad,), np.float32)
        for r in range(radix):
            out[r * c_pad:r * c_pad + channels] = v[r * channels:(r + 1) * channels]
        return out

    wconv_p = pad_cols(wconv_flat)
    w2_p = pad_cols(w2_perm)
    b2_p = pad_vec(b2_perm)
    s0_p, t0_p = pad_vec(s0), pad_vec(t0)            # padded lanes -> y == 0

    w1_p = np.zeros((c_pad, inter), np.float32)
    w1_p[:channels, :] = w1_dense

    j = jnp.asarray
    return {
        "c_pad": c_pad,
        "wconv_dense": j(wconv_p, dtype=jnp.bfloat16),
        "s0": j(s0_p)[None, :], "t0": j(t0_p)[None, :],
        "w1_dense": j(w1_p, dtype=jnp.bfloat16),
        "s1": j(s1)[None, :], "t1": j(t1)[None, :],
        "w2_perm": j(w2_p, dtype=jnp.bfloat16),
        "b2_perm": j(b2_p)[None, :],
    }


# --------------------------------------------------------------------------- #
# Pure-JAX reference (mirrors the PyTorch forward, BN in eval mode, f32).
# --------------------------------------------------------------------------- #
def ref_forward(x, p, *, radix, groups, channels, stride, padding, dilation):
    def conv1d(inp, w, b, g, pad):
        y = lax.conv_general_dilated(
            inp, w, (stride if pad else 1,), [(pad, pad)],
            rhs_dilation=(dilation if pad else 1,),
            dimension_numbers=("NCH", "OIH", "NCH"), feature_group_count=g)
        return y + b[None, :, None]

    def bn(v, gamma, beta, mean, var):
        return (v - mean[None, :, None]) / jnp.sqrt(var[None, :, None] + _EPS) \
            * gamma[None, :, None] + beta[None, :, None]

    y = conv1d(x, p["w_conv"], p["b_conv"], groups * radix, padding)
    y = jnp.maximum(bn(y, p["gamma0"], p["beta0"], p["mean0"], p["var0"]), 0.0)
    B, c_r, L = y.shape
    spl = y.reshape(B, radix, channels, L)
    gap = spl.sum(axis=1) if radix > 1 else y
    gap = gap.mean(axis=2, keepdims=True)
    z = conv1d(gap, p["w1"], p["b1"], groups, 0)
    z = jnp.maximum(bn(z, p["gamma1"], p["beta1"], p["mean1"], p["var1"]), 0.0)
    a = conv1d(z, p["w2"], p["b2"], groups, 0)                     # (B, C*r, 1)
    if radix > 1:
        a2 = a.reshape(B, groups, radix, -1)
        a2 = jnp.transpose(a2, (0, 2, 1, 3))
        a2 = jax.nn.softmax(a2, axis=1)
        att = a2.reshape(B, radix, channels, 1)
        out = (att * spl).sum(axis=1)
    else:
        out = jax.nn.sigmoid(a) * y
    return out


# --------------------------------------------------------------------------- #
if __name__ == "__main__":
    B, Cin, L = 2, 8, 16
    channels, ksize = 8, 3
    stride, padding, dilation = 1, 1, 1
    groups, radix, reduction_factor = 1, 2, 4

    key = jax.random.PRNGKey(0)
    kx, kp = jax.random.split(key)
    x = jax.random.normal(kx, (B, Cin, L), jnp.float32)

    raw, inter = init_raw_params(kp, Cin, channels, ksize, groups, radix,
                                 reduction_factor)
    kparams = prepare_kernel_params(raw, in_channels=Cin, channels=channels,
                                    groups=groups, radix=radix, inter=inter)

    out = split_attention_conv1d(x, kparams, radix=radix, channels=channels,
                                 kernel_size=ksize, stride=stride,
                                 padding=padding, dilation=dilation)
    out = jax.block_until_ready(out)

    ref = ref_forward(x, raw, radix=radix, groups=groups, channels=channels,
                      stride=stride, padding=padding, dilation=dilation)

    assert out.shape == (B, channels, L), out.shape
    # bf16 matmul operands (f32 accumulation) + approx reciprocal -> relax
    # tolerance vs the all-f32 reference.
    np.testing.assert_allclose(np.asarray(out), np.asarray(ref),
                               rtol=2e-2, atol=2e-2)
    print("KERNEL_OK")
</pallas_src>

<mosaic_0001>
module attributes {stable_mosaic.version = 11 : i64} {
  func.func @_split_attention_kernel(%arg0: i32, %arg1: memref<1x16x24xbf16, #tpu.memory_space<vmem>>, %arg2: memref<24x256xbf16, #tpu.memory_space<vmem>>, %arg3: memref<1x256xf32, #tpu.memory_space<vmem>>, %arg4: memref<1x256xf32, #tpu.memory_space<vmem>>, %arg5: memref<128x32xbf16, #tpu.memory_space<vmem>>, %arg6: memref<1x32xf32, #tpu.memory_space<vmem>>, %arg7: memref<1x32xf32, #tpu.memory_space<vmem>>, %arg8: memref<32x256xbf16, #tpu.memory_space<vmem>>, %arg9: memref<1x256xf32, #tpu.memory_space<vmem>>, %arg10: memref<1x16x128xf32, #tpu.memory_space<vmem>>) attributes {dimension_semantics = [#tpu.dimension_semantics<parallel>], iteration_bounds = array<i64: 2>, scalar_prefetch = 0 : i64, scratch_operands = 0 : i64, tpu.core_type = #tpu.core_type<tc>, window_params = [{transform_indices = @transform_0, window_bounds = array<i64: 1, 16, 24>}, {pipeline_mode = #tpu.pipeline_mode<synchronous>, transform_indices = @transform_1, window_bounds = array<i64: 24, 256>}, {pipeline_mode = #tpu.pipeline_mode<synchronous>, transform_indices = @transform_2, window_bounds = array<i64: 1, 256>}, {pipeline_mode = #tpu.pipeline_mode<synchronous>, transform_indices = @transform_3, window_bounds = array<i64: 1, 256>}, {pipeline_mode = #tpu.pipeline_mode<synchronous>, transform_indices = @transform_4, window_bounds = array<i64: 128, 32>}, {pipeline_mode = #tpu.pipeline_mode<synchronous>, transform_indices = @transform_5, window_bounds = array<i64: 1, 32>}, {pipeline_mode = #tpu.pipeline_mode<synchronous>, transform_indices = @transform_6, window_bounds = array<i64: 1, 32>}, {pipeline_mode = #tpu.pipeline_mode<synchronous>, transform_indices = @transform_7, window_bounds = array<i64: 32, 256>}, {pipeline_mode = #tpu.pipeline_mode<synchronous>, transform_indices = @transform_8, window_bounds = array<i64: 1, 256>}, {transform_indices = @transform_9, window_bounds = array<i64: 1, 16, 128>}]} {
    %c0 = arith.constant 0 : index
    %c0_0 = arith.constant 0 : index
    %c0_1 = arith.constant 0 : index
    %0 = vector.load %arg1[%c0, %c0_0, %c0_1] : memref<1x16x24xbf16, #tpu.memory_space<vmem>>, vector<1x16x24xbf16>
    %1 = vector.shape_cast %0 : vector<1x16x24xbf16> to vector<16x24xbf16>
    %c0_2 = arith.constant 0 : index
    %c0_3 = arith.constant 0 : index
    %2 = vector.load %arg2[%c0_2, %c0_3] : memref<24x256xbf16, #tpu.memory_space<vmem>>, vector<24x256xbf16>
    %cst = arith.constant dense<0.000000e+00> : vector<16x256xf32>
    %3 = tpu.matmul %1, %2, %cst {dimension_numbers = #tpu.dot_dimension_numbers<[1], [0], [0], [1], [0, 0, 1, 1], [], []>} : vector<16x24xbf16>, vector<24x256xbf16>, vector<16x256xf32> -> vector<16x256xf32>
    %c0_4 = arith.constant 0 : index
    %c0_5 = arith.constant 0 : index
    %4 = vector.load %arg3[%c0_4, %c0_5] : memref<1x256xf32, #tpu.memory_space<vmem>>, vector<1x256xf32>
    %5 = vector.broadcast %4 : vector<1x256xf32> to vector<16x256xf32>
    %6 = arith.mulf %3, %5 : vector<16x256xf32>
    %c0_6 = arith.constant 0 : index
    %c0_7 = arith.constant 0 : index
    %7 = vector.load %arg4[%c0_6, %c0_7] : memref<1x256xf32, #tpu.memory_space<vmem>>, vector<1x256xf32>
    %8 = vector.broadcast %7 : vector<1x256xf32> to vector<16x256xf32>
    %9 = arith.addf %6, %8 : vector<16x256xf32>
    %cst_8 = arith.constant 0.000000e+00 : f32
    %10 = vector.broadcast %cst_8 : f32 to vector<16x256xf32>
    %11 = arith.maximumf %9, %10 : vector<16x256xf32>
    %12 = vector.shape_cast %11 : vector<16x256xf32> to vector<1x16x256xf32>
    %13 = vector.extract_strided_slice %12 {offsets = [0, 0, 0], sizes = [1, 16, 128], strides = [1, 1, 1]} : vector<1x16x256xf32> to vector<1x16x128xf32>
    %14 = vector.extract_strided_slice %12 {offsets = [0, 0, 128], sizes = [1, 16, 128], strides = [1, 1, 1]} : vector<1x16x256xf32> to vector<1x16x128xf32>
    %15 = arith.addf %13, %14 : vector<1x16x128xf32>
    %cst_9 = arith.constant dense<0.000000e+00> : vector<1x128xf32>
    %16 = vector.multi_reduction <add>, %15, %cst_9 [1] : vector<1x16x128xf32> to vector<1x128xf32>
    %17 = arith.truncf %16 : vector<1x128xf32> to vector<1x128xbf16>
    %c0_10 = arith.constant 0 : index
    %c0_11 = arith.constant 0 : index
    %18 = vector.load %arg5[%c0_10, %c0_11] : memref<128x32xbf16, #tpu.memory_space<vmem>>, vector<128x32xbf16>
    %cst_12 = arith.constant dense<0.000000e+00> : vector<1x32xf32>
    %19 = tpu.matmul %17, %18, %cst_12 {dimension_numbers = #tpu.dot_dimension_numbers<[1], [0], [0], [1], [0, 0, 1, 1], [], []>} : vector<1x128xbf16>, vector<128x32xbf16>, vector<1x32xf32> -> vector<1x32xf32>
    %c0_13 = arith.constant 0 : index
    %c0_14 = arith.constant 0 : index
    %20 = vector.load %arg6[%c0_13, %c0_14] : memref<1x32xf32, #tpu.memory_space<vmem>>, vector<1x32xf32>
    %21 = arith.mulf %19, %20 : vector<1x32xf32>
    %c0_15 = arith.constant 0 : index
    %c0_16 = arith.constant 0 : index
    %22 = vector.load %arg7[%c0_15, %c0_16] : memref<1x32xf32, #tpu.memory_space<vmem>>, vector<1x32xf32>
    %23 = arith.addf %21, %22 : vector<1x32xf32>
    %cst_17 = arith.constant 0.000000e+00 : f32
    %24 = vector.broadcast %cst_17 : f32 to vector<1x32xf32>
    %25 = arith.maximumf %23, %24 : vector<1x32xf32>
    %26 = arith.truncf %25 : vector<1x32xf32> to vector<1x32xbf16>
    %c0_18 = arith.constant 0 : index
    %c0_19 = arith.constant 0 : index
    %27 = vector.load %arg8[%c0_18, %c0_19] : memref<32x256xbf16, #tpu.memory_space<vmem>>, vector<32x256xbf16>
    %cst_20 = arith.constant dense<0.000000e+00> : vector<1x256xf32>
    %28 = tpu.matmul %26, %27, %cst_20 {dimension_numbers = #tpu.dot_dimension_numbers<[1], [0], [0], [1], [0, 0, 1, 1], [], []>} : vector<1x32xbf16>, vector<32x256xbf16>, vector<1x256xf32> -> vector<1x256xf32>
    %c0_21 = arith.constant 0 : index
    %c0_22 = arith.constant 0 : index
    %29 = vector.load %arg9[%c0_21, %c0_22] : memref<1x256xf32, #tpu.memory_space<vmem>>, vector<1x256xf32>
    %30 = arith.addf %28, %29 : vector<1x256xf32>
    %31 = vector.extract_strided_slice %30 {offsets = [0, 0], sizes = [1, 128], strides = [1, 1]} : vector<1x256xf32> to vector<1x128xf32>
    %32 = vector.extract_strided_slice %30 {offsets = [0, 128], sizes = [1, 128], strides = [1, 1]} : vector<1x256xf32> to vector<1x128xf32>
    %33 = arith.maximumf %31, %32 : vector<1x128xf32>
    %34 = arith.subf %31, %33 : vector<1x128xf32>
    %35 = math.exp %34 : vector<1x128xf32>
    %36 = arith.subf %32, %33 : vector<1x128xf32>
    %37 = math.exp %36 : vector<1x128xf32>
    %38 = arith.addf %35, %37 : vector<1x128xf32>
    %39 = tpu.reciprocal %38 {approx = true} : vector<1x128xf32> -> vector<1x128xf32>
    %cst_23 = arith.constant 0.000000e+00 : f32
    %40 = vector.broadcast %cst_23 : f32 to vector<1x16x128xf32>
    %41 = arith.mulf %35, %39 : vector<1x128xf32>
    %42 = vector.shape_cast %41 : vector<1x128xf32> to vector<1x1x128xf32>
    %43 = vector.extract_strided_slice %12 {offsets = [0, 0, 0], sizes = [1, 16, 128], strides = [1, 1, 1]} : vector<1x16x256xf32> to vector<1x16x128xf32>
    %44 = vector.broadcast %42 : vector<1x1x128xf32> to vector<1x16x128xf32>
    %45 = arith.mulf %44, %43 : vector<1x16x128xf32>
    %46 = arith.addf %40, %45 : vector<1x16x128xf32>
    %47 = arith.mulf %37, %39 : vector<1x128xf32>
    %48 = vector.shape_cast %47 : vector<1x128xf32> to vector<1x1x128xf32>
    %49 = vector.extract_strided_slice %12 {offsets = [0, 0, 128], sizes = [1, 16, 128], strides = [1, 1, 1]} : vector<1x16x256xf32> to vector<1x16x128xf32>
    %50 = vector.broadcast %48 : vector<1x1x128xf32> to vector<1x16x128xf32>
    %51 = arith.mulf %50, %49 : vector<1x16x128xf32>
    %52 = arith.addf %46, %51 : vector<1x16x128xf32>
    %c0_24 = arith.constant 0 : index
    %c0_25 = arith.constant 0 : index
    %c0_26 = arith.constant 0 : index
    %53 = vector.load %arg10[%c0_24, %c0_25, %c0_26] : memref<1x16x128xf32, #tpu.memory_space<vmem>>, vector<1x16x128xf32>
    tpu.vector_store %arg10[%c0_24, %c0_25, %c0_26], %52 {strides = array<i32>} : memref<1x16x128xf32, #tpu.memory_space<vmem>>, vector<1x16x128xf32>,
    return
  }
  func.func @transform_0(%arg0: i32) -> (i32, i32, i32) {
    %c0_i32 = arith.constant 0 : i32
    %c0_i32_0 = arith.constant 0 : i32
    %c0_i32_1 = arith.constant 0 : i32
    return %arg0, %c0_i32, %c0_i32_0 : i32, i32, i32
  }
  func.func @transform_1(%arg0: i32) -> (i32, i32) {
    %c0_i32 = arith.constant 0 : i32
    %c0_i32_0 = arith.constant 0 : i32
    %c0_i32_1 = arith.constant 0 : i32
    return %c0_i32, %c0_i32_0 : i32, i32
  }
  func.func @transform_2(%arg0: i32) -> (i32, i32) {
    %c0_i32 = arith.constant 0 : i32
    %c0_i32_0 = arith.constant 0 : i32
    %c0_i32_1 = arith.constant 0 : i32
    return %c0_i32, %c0_i32_0 : i32, i32
  }
  func.func @transform_3(%arg0: i32) -> (i32, i32) {
    %c0_i32 = arith.constant 0 : i32
    %c0_i32_0 = arith.constant 0 : i32
    %c0_i32_1 = arith.constant 0 : i32
    return %c0_i32, %c0_i32_0 : i32, i32
  }
  func.func @transform_4(%arg0: i32) -> (i32, i32) {
    %c0_i32 = arith.constant 0 : i32
    %c0_i32_0 = arith.constant 0 : i32
    %c0_i32_1 = arith.constant 0 : i32
    return %c0_i32, %c0_i32_0 : i32, i32
  }
  func.func @transform_5(%arg0: i32) -> (i32, i32) {
    %c0_i32 = arith.constant 0 : i32
    %c0_i32_0 = arith.constant 0 : i32
    %c0_i32_1 = arith.constant 0 : i32
    return %c0_i32, %c0_i32_0 : i32, i32
  }
  func.func @transform_6(%arg0: i32) -> (i32, i32) {
    %c0_i32 = arith.constant 0 : i32
    %c0_i32_0 = arith.constant 0 : i32
    %c0_i32_1 = arith.constant 0 : i32
    return %c0_i32, %c0_i32_0 : i32, i32
  }
  func.func @transform_7(%arg0: i32) -> (i32, i32) {
    %c0_i32 = arith.constant 0 : i32
    %c0_i32_0 = arith.constant 0 : i32
    %c0_i32_1 = arith.constant 0 : i32
    return %c0_i32, %c0_i32_0 : i32, i32
  }
  func.func @transform_8(%arg0: i32) -> (i32, i32) {
    %c0_i32 = arith.constant 0 : i32
    %c0_i32_0 = arith.constant 0 : i32
    %c0_i32_1 = arith.constant 0 : i32
    return %c0_i32, %c0_i32_0 : i32, i32
  }
  func.func @transform_9(%arg0: i32) -> (i32, i32, i32) {
    %c0_i32 = arith.constant 0 : i32
    %c0_i32_0 = arith.constant 0 : i32
    %c0_i32_1 = arith.constant 0 : i32
    return %arg0, %c0_i32, %c0_i32_0 : i32, i32, i32
  }
}

</mosaic_0001>

<llo_original>
// kernel: tpu_custom_call.1
$region0: #{tpu_custom_call.1}
  #allocation0 [shape = 'u32[]', space=smem, size = 0x4, offset = 0x4, fixed_abs, tag = 'smem constant byte address 0x4 - core index']
  #allocation1 [shape = 'u32[72,128]{1,0:T(1,128)}', space=vmem, size = 0x9000, scoped, tag = 'internal scratch']
  %s0 = inlined_call_operand.vmem [shape: bf16[2,16,24], index: 0, kind: input, shape index: {}]
  %s1 = inlined_call_operand.vmem [shape: bf16[24,256], index: 1, kind: input, shape index: {}]
  %s2 = inlined_call_operand.vmem [shape: f32[1,256], index: 2, kind: input, shape index: {}]
  %s3 = inlined_call_operand.vmem [shape: f32[1,256], index: 3, kind: input, shape index: {}]
  %s4 = inlined_call_operand.vmem [shape: bf16[128,32], index: 4, kind: input, shape index: {}]
  %s5 = inlined_call_operand.vmem [shape: f32[1,32], index: 5, kind: input, shape index: {}]
  %s6 = inlined_call_operand.vmem [shape: f32[1,32], index: 6, kind: input, shape index: {}]
  %s7 = inlined_call_operand.vmem [shape: bf16[32,256], index: 7, kind: input, shape index: {}]
  %s8 = inlined_call_operand.vmem [shape: f32[1,256], index: 8, kind: input, shape index: {}]
  %s9 = inlined_call_operand.hbm [shape: f32[2,16,128], index: 9, kind: output, shape index: {}]
  %s10 = sld [smem:[#allocation0]]
  $region69: #{tpu_custom_call.1} parent=0
    _
  %s12 = ssub.s32 1, %s10
  %s13 = scalar_select 0, %s12, %s10
  $region1: #{tpu_custom_call.1} parent=0
    #allocation2 [shape = 'u8[16384]{0}', space=vmem, size = 0x4000, scoped, tag = 'output window, operand 0']
    #allocation3 [shape = 's32[2]{0}', space=sflag, size = 0x8, scoped, tag = 'scoped memory for tpu_custom_call.1']
    %14 = vsyncpa [#allocation3], 0
    %s15 = scalar_lea.sflag [#allocation3], 1
    %16 = vsyncpa %s15, 0
    loop: start=0, step=1, limit=4
    $region2: #{tpu_custom_call.1} parent=1 // loop_pre_header
      _
    $region3: #{tpu_custom_call.1} parent=1 // loop_header
      %s18 = sphi 0, %s22
      %p19 = scmp.ge.s32.totalorder %s18, 4
      %s28 = sphi 0, %s30
      %s31 = sphi 0, %s28
      %s32 = sphi 0, %s31
      %s48 = sphi 0, %s32
      %s52 = sphi 0, %s52
      %s54 = sphi 0, %s52
      %s55 = sphi 0, %s54
      %s69 = sphi 0, %s55
      %s73 = sphi 0, %s73
      %s75 = sphi 0, %s73
      %s76 = sphi 0, %s75
      %s90 = sphi 0, %s76
      %s94 = sphi 0, %s94
      %s96 = sphi 0, %s94
      %s97 = sphi 0, %s96
      %s111 = sphi 0, %s97
      %s115 = sphi 0, %s115
      %s117 = sphi 0, %s115
      %s118 = sphi 0, %s117
      %s132 = sphi 0, %s118
      %s136 = sphi 0, %s136
      %s138 = sphi 0, %s136
      %s139 = sphi 0, %s138
      %s153 = sphi 0, %s139
      %s157 = sphi 0, %s157
      %s159 = sphi 0, %s157
      %s160 = sphi 0, %s159
      %s174 = sphi 0, %s160
      %s178 = sphi 0, %s178
      %s180 = sphi 0, %s178
      %s181 = sphi 0, %s180
      %s195 = sphi 0, %s181
      %s199 = sphi 0, %s199
      %s201 = sphi 0, %s199
      %s202 = sphi 0, %s201
      %s216 = sphi 0, %s202
      %s222 = sphi 0, %s224
      %s225 = sphi 0, %s222
      %s226 = sphi 0, %s225
      %s242 = sphi 0, %s226
    $region4: #{tpu_custom_call.1} parent=1 // loop_header_branch
      %21 = sbr.rel (%p19) target = $region8
    $region5: #{tpu_custom_call.1} parent=1 // loop_body
      %s23 = ssub.s32 %s18, 1
      %s24 = ssub.s32 %s18, 2
      %s25 = sadd.s32 %s18, 1
      %s26 = ssub.s32 %s18, %s25
      %p27 = scmp.eq.s32.totalorder %s26, 0
      %s29 = sadd.s32 %s28, 1
      %s30 = scalar_select %p27, %s28, %s29
      %p33 = pneg %p27
      %p34 = scmp.eq.s32.totalorder %s18, 1
      %p35 = por %p33, %p34
      %p36 = scmp.ne.s32.totalorder %s28, %s31
      %p37 = scmp.eq.s32.totalorder %s18, 0
      %p38 = por %p36, %p37
      %p39 = scmp.ne.s32.totalorder %s28, %s31
      %p40 = scmp.eq.s32.totalorder %s23, 1
      %p41 = por %p39, %p40
      %p42 = scmp.ne.s32.totalorder %s31, %s32
      %p43 = scmp.eq.s32.totalorder %s23, 0
      %p44 = por %p42, %p43
      %p45 = scmp.ne.s32.totalorder %s31, %s32
      %p46 = scmp.eq.s32.totalorder %s24, 1
      %p47 = por %p45, %p46
      %p49 = scmp.ne.s32.totalorder %s32, %s48
      %p50 = scmp.eq.s32.totalorder %s24, 0
      %p51 = por %p49, %p50
      %s53 = sadd.s32 %s52, 1
      %p56 = scmp.eq.s32.totalorder %s18, 1
      %p57 = scmp.ne.s32.totalorder %s52, %s54
      %p58 = scmp.eq.s32.totalorder %s18, 0
      %p59 = por %p57, %p58
      %p60 = scmp.ne.s32.totalorder %s52, %s54
      %p61 = scmp.eq.s32.totalorder %s23, 1
      %p62 = por %p60, %p61
      %p63 = scmp.ne.s32.totalorder %s54, %s55
      %p64 = scmp.eq.s32.totalorder %s23, 0
      %p65 = por %p63, %p64
      %p66 = scmp.ne.s32.totalorder %s54, %s55
      %p67 = scmp.eq.s32.totalorder %s24, 1
      %p68 = por %p66, %p67
      %p70 = scmp.ne.s32.totalorder %s55, %s69
      %p71 = scmp.eq.s32.totalorder %s24, 0
      %p72 = por %p70, %p71
      %s74 = sadd.s32 %s73, 1
      %p77 = scmp.eq.s32.totalorder %s18, 1
      %p78 = scmp.ne.s32.totalorder %s73, %s75
      %p79 = scmp.eq.s32.totalorder %s18, 0
      %p80 = por %p78, %p79
      %p81 = scmp.ne.s32.totalorder %s73, %s75
      %p82 = scmp.eq.s32.totalorder %s23, 1
      %p83 = por %p81, %p82
      %p84 = scmp.ne.s32.totalorder %s75, %s76
      %p85 = scmp.eq.s32.totalorder %s23, 0
      %p86 = por %p84, %p85
      %p87 = scmp.ne.s32.totalorder %s75, %s76
      %p88 = scmp.eq.s32.totalorder %s24, 1
      %p89 = por %p87, %p88
      %p91 = scmp.ne.s32.totalorder %s76, %s90
      %p92 = scmp.eq.s32.totalorder %s24, 0
      %p93 = por %p91, %p92
      %s95 = sadd.s32 %s94, 1
      %p98 = scmp.eq.s32.totalorder %s18, 1
      %p99 = scmp.ne.s32.totalorder %s94, %s96
      %p100 = scmp.eq.s32.totalorder %s18, 0
      %p101 = por %p99, %p100
      %p102 = scmp.ne.s32.totalorder %s94, %s96
      %p103 = scmp.eq.s32.totalorder %s23, 1
      %p104 = por %p102, %p103
      %p105 = scmp.ne.s32.totalorder %s96, %s97
      %p106 = scmp.eq.s32.totalorder %s23, 0
      %p107 = por %p105, %p106
      %p108 = scmp.ne.s32.totalorder %s96, %s97
      %p109 = scmp.eq.s32.totalorder %s24, 1
      %p110 = por %p108, %p109
      %p112 = scmp.ne.s32.totalorder %s97, %s111
      %p113 = scmp.eq.s32.totalorder %s24, 0
      %p114 = por %p112, %p113
      %s116 = sadd.s32 %s115, 1
      %p119 = scmp.eq.s32.totalorder %s18, 1
      %p120 = scmp.ne.s32.totalorder %s115, %s117
      %p121 = scmp.eq.s32.totalorder %s18, 0
      %p122 = por %p120, %p121
      %p123 = scmp.ne.s32.totalorder %s115, %s117
      %p124 = scmp.eq.s32.totalorder %s23, 1
      %p125 = por %p123, %p124
      %p126 = scmp.ne.s32.totalorder %s117, %s118
      %p127 = scmp.eq.s32.totalorder %s23, 0
      %p128 = por %p126, %p127
      %p129 = scmp.ne.s32.totalorder %s117, %s118
      %p130 = scmp.eq.s32.totalorder %s24, 1
      %p131 = por %p129, %p130
      %p133 = scmp.ne.s32.totalorder %s118, %s132
      %p134 = scmp.eq.s32.totalorder %s24, 0
      %p135 = por %p133, %p134
      %s137 = sadd.s32 %s136, 1
      %p140 = scmp.eq.s32.totalorder %s18, 1
      %p141 = scmp.ne.s32.totalorder %s136, %s138
      %p142 = scmp.eq.s32.totalorder %s18, 0
      %p143 = por %p141, %p142
      %p144 = scmp.ne.s32.totalorder %s136, %s138
      %p145 = scmp.eq.s32.totalorder %s23, 1
      %p146 = por %p144, %p145
      %p147 = scmp.ne.s32.totalorder %s138, %s139
      %p148 = scmp.eq.s32.totalorder %s23, 0
      %p149 = por %p147, %p148
      %p150 = scmp.ne.s32.totalorder %s138, %s139
      %p151 = scmp.eq.s32.totalorder %s24, 1
      %p152 = por %p150, %p151
      %p154 = scmp.ne.s32.totalorder %s139, %s153
      %p155 = scmp.eq.s32.totalorder %s24, 0
      %p156 = por %p154, %p155
      %s158 = sadd.s32 %s157, 1
      %p161 = scmp.eq.s32.totalorder %s18, 1
      %p162 = scmp.ne.s32.totalorder %s157, %s159
      %p163 = scmp.eq.s32.totalorder %s18, 0
      %p164 = por %p162, %p163
      %p165 = scmp.ne.s32.totalorder %s157, %s159
      %p166 = scmp.eq.s32.totalorder %s23, 1
      %p167 = por %p165, %p166
      %p168 = scmp.ne.s32.totalorder %s159, %s160
      %p169 = scmp.eq.s32.totalorder %s23, 0
      %p170 = por %p168, %p169
      %p171 = scmp.ne.s32.totalorder %s159, %s160
      %p172 = scmp.eq.s32.totalorder %s24, 1
      %p173 = por %p171, %p172
      %p175 = scmp.ne.s32.totalorder %s160, %s174
      %p176 = scmp.eq.s32.totalorder %s24, 0
      %p177 = por %p175, %p176
      %s179 = sadd.s32 %s178, 1
      %p182 = scmp.eq.s32.totalorder %s18, 1
      %p183 = scmp.ne.s32.totalorder %s178, %s180
      %p184 = scmp.eq.s32.totalorder %s18, 0
      %p185 = por %p183, %p184
      %p186 = scmp.ne.s32.totalorder %s178, %s180
      %p187 = scmp.eq.s32.totalorder %s23, 1
      %p188 = por %p186, %p187
      %p189 = scmp.ne.s32.totalorder %s180, %s181
      %p190 = scmp.eq.s32.totalorder %s23, 0
      %p191 = por %p189, %p190
      %p192 = scmp.ne.s32.totalorder %s180, %s181
      %p193 = scmp.eq.s32.totalorder %s24, 1
      %p194 = por %p192, %p193
      %p196 = scmp.ne.s32.totalorder %s181, %s195
      %p197 = scmp.eq.s32.totalorder %s24, 0
      %p198 = por %p196, %p197
      %s200 = sadd.s32 %s199, 1
      %p203 = scmp.eq.s32.totalorder %s18, 1
      %p204 = scmp.ne.s32.totalorder %s199, %s201
      %p205 = scmp.eq.s32.totalorder %s18, 0
      %p206 = por %p204, %p205
      %p207 = scmp.ne.s32.totalorder %s199, %s201
      %p208 = scmp.eq.s32.totalorder %s23, 1
      %p209 = por %p207, %p208
      %p210 = scmp.ne.s32.totalorder %s201, %s202
      %p211 = scmp.eq.s32.totalorder %s23, 0
      %p212 = por %p210, %p211
      %p213 = scmp.ne.s32.totalorder %s201, %s202
      %p214 = scmp.eq.s32.totalorder %s24, 1
      %p215 = por %p213, %p214
      %p217 = scmp.ne.s32.totalorder %s202, %s216
      %p218 = scmp.eq.s32.totalorder %s24, 0
      %p219 = por %p217, %p218
      %s220 = ssub.s32 %s18, %s25
      %p221 = scmp.eq.s32.totalorder %s220, 0
      %s223 = sadd.s32 %s222, 1
      %s224 = scalar_select %p221, %s222, %s223
      %p227 = pneg %p221
      %p228 = scmp.eq.s32.totalorder %s18, 1
      %p229 = por %p227, %p228
      %p230 = scmp.ne.s32.totalorder %s222, %s225
      %p231 = scmp.eq.s32.totalorder %s18, 0
      %p232 = por %p230, %p231
      %p233 = scmp.ne.s32.totalorder %s222, %s225
      %p234 = scmp.eq.s32.totalorder %s23, 1
      %p235 = por %p233, %p234
      %p236 = scmp.ne.s32.totalorder %s225, %s226
      %p237 = scmp.eq.s32.totalorder %s23, 0
      %p238 = por %p236, %p237
      %p239 = scmp.ne.s32.totalorder %s225, %s226
      %p240 = scmp.eq.s32.totalorder %s24, 1
      %p241 = por %p239, %p240
      %p243 = scmp.ne.s32.totalorder %s226, %s242
      %p244 = scmp.eq.s32.totalorder %s24, 0
      %p245 = por %p243, %p244
      %p246 = scmp.le.s32.totalorder 1, %s18
      %p247 = scmp.lt.s32.totalorder %s18, 3
      %p248 = pnand %p246, %p247
      %p249 = pneg %p248
      // Predicated region
      $region9: #{tpu_custom_call.1} parent=5 // pred_check
        _
      $region10: #{tpu_custom_call.1} parent=5 // pred_check_branch
        %251 = sbr.rel (%p248) target = $region12
      $region11: #{tpu_custom_call.1} parent=5 // pred_region
        %s252 = ssub.s32 %s18, 1
        // Predicated region
        $region13: #{tpu_custom_call.1} parent=11 // pred_check
          %p253 = pneg %p65
        $region14: #{tpu_custom_call.1} parent=11 // pred_check_branch
          %255 = sbr.rel (%p253) target = $region16
        $region15: #{tpu_custom_call.1} parent=11 // pred_region
          _
        $region16: #{tpu_custom_call.1} parent=11 // pred_fallthru
          _
        // Predicated region
        $region17: #{tpu_custom_call.1} parent=11 // pred_check
          %p256 = pneg %p86
        $region18: #{tpu_custom_call.1} parent=11 // pred_check_branch
          %258 = sbr.rel (%p256) target = $region20
        $region19: #{tpu_custom_call.1} parent=11 // pred_region
          _
        $region20: #{tpu_custom_call.1} parent=11 // pred_fallthru
          _
        // Predicated region
        $region21: #{tpu_custom_call.1} parent=11 // pred_check
          %p259 = pneg %p107
        $region22: #{tpu_custom_call.1} parent=11 // pred_check_branch
          %261 = sbr.rel (%p259) target = $region24
        $region23: #{tpu_custom_call.1} parent=11 // pred_region
          _
        $region24: #{tpu_custom_call.1} parent=11 // pred_fallthru
          _
        // Predicated region
        $region25: #{tpu_custom_call.1} parent=11 // pred_check
          %p262 = pneg %p128
        $region26: #{tpu_custom_call.1} parent=11 // pred_check_branch
          %264 = sbr.rel (%p262) target = $region28
        $region27: #{tpu_custom_call.1} parent=11 // pred_region
          _
        $region28: #{tpu_custom_call.1} parent=11 // pred_fallthru
          _
        // Predicated region
        $region29: #{tpu_custom_call.1} parent=11 // pred_check
          %p265 = pneg %p149
        $region30: #{tpu_custom_call.1} parent=11 // pred_check_branch
          %267 = sbr.rel (%p265) target = $region32
        $region31: #{tpu_custom_call.1} parent=11 // pred_region
          _
        $region32: #{tpu_custom_call.1} parent=11 // pred_fallthru
          _
        // Predicated region
        $region33: #{tpu_custom_call.1} parent=11 // pred_check
          %p268 = pneg %p170
        $region34: #{tpu_custom_call.1} parent=11 // pred_check_branch
          %270 = sbr.rel (%p268) target = $region36
        $region35: #{tpu_custom_call.1} parent=11 // pred_region
          _
        $region36: #{tpu_custom_call.1} parent=11 // pred_fallthru
          _
        // Predicated region
        $region37: #{tpu_custom_call.1} parent=11 // pred_check
          %p271 = pneg %p191
        $region38: #{tpu_custom_call.1} parent=11 // pred_check_branch
          %273 = sbr.rel (%p271) target = $region40
        $region39: #{tpu_custom_call.1} parent=11 // pred_region
          _
        $region40: #{tpu_custom_call.1} parent=11 // pred_fallthru
          _
        // Predicated region
        $region41: #{tpu_custom_call.1} parent=11 // pred_check
          %p274 = pneg %p212
        $region42: #{tpu_custom_call.1} parent=11 // pred_check_branch
          %276 = sbr.rel (%p274) target = $region44
        $region43: #{tpu_custom_call.1} parent=11 // pred_region
          _
        $region44: #{tpu_custom_call.1} parent=11 // pred_fallthru
          _
      $region12: #{tpu_custom_call.1} parent=5 // pred_fallthru
        _
      %p277 = scmp.lt.s32.totalorder %s18, 2
      // Predicated region
      $region45: #{tpu_custom_call.1} parent=5 // pred_check
        %p278 = pneg %p277
      $region46: #{tpu_custom_call.1} parent=5 // pred_check_branch
        %280 = sbr.rel (%p278) target = $region48
      $region47: #{tpu_custom_call.1} parent=5 // pred_region
        // Predicated region
        $region49: #{tpu_custom_call.1} parent=47 // pred_check
          %p281 = pneg %p38
        $region50: #{tpu_custom_call.1} parent=47 // pred_check_branch
          %283 = sbr.rel (%p281) target = $region52
        $region51: #{tpu_custom_call.1} parent=47 // pred_region
          %p284 = scmp.lt.s32.totalorder %s18, 1
          %s285 = scalar_select %p284, %s18, 1
          %s286 = smul.addr %s285, 2
          %s287 = smul.addr %s286, 4
          %s288 = scalar_lea.vmem %s0, %s287
        $region52: #{tpu_custom_call.1} parent=47 // pred_fallthru
          _
      $region48: #{tpu_custom_call.1} parent=5 // pred_fallthru
        _
      %p289 = scmp.le.s32.totalorder 1, %s18
      %p290 = scmp.lt.s32.totalorder %s18, 3
      %p291 = pnand %p289, %p290
      %p292 = pneg %p291
      // Predicated region
      $region53: #{tpu_custom_call.1} parent=5 // pred_check
        _
      $region54: #{tpu_custom_call.1} parent=5 // pred_check_branch
        %294 = sbr.rel (%p291) target = $region56
      $region55: #{tpu_custom_call.1} parent=5 // pred_region
        %s295 = ssub.s32 %s18, 1
        %p296 = scmp.lt.s32.totalorder %s23, 1
        %s297 = scalar_select %p296, %s23, 1
        %s298 = smul.addr %s297, 2
        %s299 = smul.addr %s298, 4
        %s300 = scalar_lea.vmem %s0, %s299
        %p301 = pneg %p44
        %p302 = pneg %p41
        %p303 = pneg %p65
        %p304 = pneg %p62
        %p305 = pneg %p86
        %p306 = pneg %p83
        %p307 = pneg %p107
        %p308 = pneg %p104
        %p309 = pneg %p128
        %p310 = pneg %p125
        %p311 = pneg %p149
        %p312 = pneg %p146
        %p313 = pneg %p170
        %p314 = pneg %p167
        %p315 = pneg %p191
        %p316 = pneg %p188
        %p317 = pneg %p212
        %p318 = pneg %p209
        %p319 = pneg %p238
        %p320 = pneg %p235
        %s321 = sand.u32 %s225, 1
        %s322 = scalar_lea.sflag [#allocation3], %s321
        %s323 = sand.u32 %s225, 1
        %s324 = smul.addr %s323, 16
        %s325 = scalar_lea.vmem [#allocation2], %s324
        %p326 = scmp.lt.s32.totalorder %s23, 1
        %s327 = scalar_select %p326, %s23, 1
        %s328 = smul.addr %s327, 2
        %s329 = smul.addr %s328, 4
        %s330 = scalar_lea.vmem %s0, %s329
        %v332 = vld [vmem:[%s330] sm:$0xf]
        %v333 = vld [vmem:[%s330 + $0x4] sm:$0xf]
        %v334 = vld [vmem:[%s1] sm:$0xff]
        %v335 = vld [vmem:[%s1 + $0x8] sm:$0xff]
        %v336 = vld [vmem:[%s1 + $0x10] sm:$0xff]
        %v339 = vunpack.c.l.b16 %v332
        %v340 = vunpack.c.l.b16 %v333
        %v341 = vpack.c.b16 %v340, %v339
        %v345 = vunpack.c.l.b16 %v334
        %v346 = vunpack.c.h.b16 %v334
        %v347 = vunpack.c.l.b16 %v335
        %v348 = vunpack.c.h.b16 %v335
        %v349 = vunpack.c.l.b16 %v336
        %v350 = vunpack.c.h.b16 %v336
        %v351 = vpack.c.b16 %v347, %v345
        %v352 = vpack.c.b16 %v348, %v346
        %v353 = vpack.c.b16 %v349, %v349
        %v354 = vpack.c.b16 %v350, %v350
        %vm357 = vcmask 195584
        %v359 = vsel %vm357, %v341, 0
        %vm361 = vcmask 1043456
        %v363 = vsel %vm361, %v353, 0
        %v366 = vsel %vm361, %v354, 0
        %368 = vmatpush.bf16.msra.mxu0 0
        %369 = vmatpush.bf16.msra.mxu0 0
        %370 = vmatpush.bf16.msra.mxu0 0
        %371 = vmatpush.bf16.msra.mxu0 0
        %372 = vmatpush.bf16.msra.mxu0 0
        %373 = vmatpush.bf16.msra.mxu0 0
        %374 = vmatpush.bf16.msra.mxu0 %v363
        %375 = vmatpush.bf16.msra.mxu0 %v351
        %376 = vmatmul.bf16.gmra.mxu0 %v359
        %v377 = vpop.f32.mrf.mxu0
        %v378 = vadd.f32 0.0, %v377
        %v379 = vpop.f32.mrf.mxu0
        %v380 = vadd.f32 0.0, %v379
        %381 = vdwg.mxu0
        %382 = vmatpush.bf16.msra.mxu0 0
        %383 = vmatpush.bf16.msra.mxu0 0
        %384 = vmatpush.bf16.msra.mxu0 0
        %385 = vmatpush.bf16.msra.mxu0 0
        %386 = vmatpush.bf16.msra.mxu0 0
        %387 = vmatpush.bf16.msra.mxu0 0
        %388 = vmatpush.bf16.msra.mxu0 %v366
        %389 = vmatpush.bf16.msra.mxu0 %v352
        %390 = vmatmul.bf16.gmra.mxu0 %v359
        %v391 = vpop.f32.mrf.mxu0
        %v392 = vadd.f32 0.0, %v391
        %v393 = vpop.f32.mrf.mxu0
        %v394 = vadd.f32 0.0, %v393
        %395 = vdwg.mxu0
        %v396 = vld [vmem:[%s2] sm:$0x3]
        %v398 = vperm.slane %v396, 0
        %v399 = vperm.slane %v396, 1
        %v402 = vmul.f32 %v378, %v398
        %v403 = vmul.f32 %v392, %v399
        %v404 = vmul.f32 %v380, %v398
        %v405 = vmul.f32 %v394, %v399
        %v406 = vld [vmem:[%s3] sm:$0x3]
        %v408 = vperm.slane %v406, 0
        %v409 = vperm.slane %v406, 1
        %v412 = vadd.f32 %v402, %v408
        %v413 = vadd.f32 %v403, %v409
        %v414 = vadd.f32 %v404, %v408
        %v415 = vadd.f32 %v405, %v409
        %v416 = vmax.f32 %v412, 0.0
        %v417 = vmax.f32 %v413, 0.0
        %v418 = vmax.f32 %v414, 0.0
        %v419 = vmax.f32 %v415, 0.0
        %v420 = vadd.f32 %v416, %v417
        %v421 = vadd.f32 %v418, %v419
        %v422 = vadd.f32 %v420, %v421
        %v423 = vrot.slane %v422, 4
        %v424 = vadd.f32 %v422, %v423
        %v425 = vrot.slane %v424, 2
        %v426 = vadd.f32 %v424, %v425
        %v427 = vrot.slane %v426, 1
        %v428 = vadd.f32 %v426, %v427
        %v429 = vpack.c.bf16 %v428, %v428
        %v430 = vld [vmem:[%s4] sm:$0xf]
        %v431 = vld [vmem:[%s4 + $0x4] sm:$0xf]
        %v432 = vld [vmem:[%s4 + $0x8] sm:$0xf]
        %v433 = vld [vmem:[%s4 + $0xc] sm:$0xf]
        %v434 = vld [vmem:[%s4 + $0x10] sm:$0xf]
        %v435 = vld [vmem:[%s4 + $0x14] sm:$0xf]
        %v436 = vld [vmem:[%s4 + $0x18] sm:$0xf]
        %v437 = vld [vmem:[%s4 + $0x1c] sm:$0xf]
        %v438 = vld [vmem:[%s4 + $0x20] sm:$0xf]
        %v439 = vld [vmem:[%s4 + $0x24] sm:$0xf]
        %v440 = vld [vmem:[%s4 + $0x28] sm:$0xf]
        %v441 = vld [vmem:[%s4 + $0x2c] sm:$0xf]
        %v442 = vld [vmem:[%s4 + $0x30] sm:$0xf]
        %v443 = vld [vmem:[%s4 + $0x34] sm:$0xf]
        %v444 = vld [vmem:[%s4 + $0x38] sm:$0xf]
        %v445 = vld [vmem:[%s4 + $0x3c] sm:$0xf]
        %v462 = vunpack.c.l.b16 %v430
        %v463 = vunpack.c.l.b16 %v431
        %v464 = vunpack.c.l.b16 %v432
        %v465 = vunpack.c.l.b16 %v433
        %v466 = vunpack.c.l.b16 %v434
        %v467 = vunpack.c.l.b16 %v435
        %v468 = vunpack.c.l.b16 %v436
        %v469 = vunpack.c.l.b16 %v437
        %v470 = vunpack.c.l.b16 %v438
        %v471 = vunpack.c.l.b16 %v439
        %v472 = vunpack.c.l.b16 %v440
        %v473 = vunpack.c.l.b16 %v441
        %v474 = vunpack.c.l.b16 %v442
        %v475 = vunpack.c.l.b16 %v443
        %v476 = vunpack.c.l.b16 %v444
        %v477 = vunpack.c.l.b16 %v445
        %v478 = vpack.c.b16 %v463, %v462
        %v479 = vpack.c.b16 %v465, %v464
        %v480 = vpack.c.b16 %v467, %v466
        %v481 = vpack.c.b16 %v469, %v468
        %v482 = vpack.c.b16 %v471, %v470
        %v483 = vpack.c.b16 %v473, %v472
        %v484 = vpack.c.b16 %v475, %v474
        %v485 = vpack.c.b16 %v477, %v476
        %494 = vmatpush.bf16.msra.mxu0 %v485
        %495 = vmatpush.bf16.msra.mxu0 %v484
        %496 = vmatpush.bf16.msra.mxu0 %v483
        %497 = vmatpush.bf16.msra.mxu0 %v482
        %498 = vmatpush.bf16.msra.mxu0 %v481
        %499 = vmatpush.bf16.msra.mxu0 %v480
        %500 = vmatpush.bf16.msra.mxu0 %v479
        %501 = vmatpush.bf16.msra.mxu0 %v478
        %502 = vmatmul.bf16.gmra.mxu0 %v429
        %v503 = vpop.f32.mrf.mxu0
        %v504 = vadd.f32 0.0, %v503
        %v505 = vpop.f32.mrf.mxu0
        %506 = vdwg.mxu0
        %v507 = vld [vmem:[%s5] sm:$0x1]
        %v508 = vmul.f32 %v504, %v507
        %v509 = vld [vmem:[%s6] sm:$0x1]
        %v510 = vadd.f32 %v508, %v509
        %v511 = vmax.f32 %v510, 0.0
        %v512 = vpack.c.bf16 %v511, %v511
        %v513 = vld [vmem:[%s7] sm:$0xff]
        %v514 = vld [vmem:[%s7 + $0x8] sm:$0xff]
        %v515 = vld [vmem:[%s7 + $0x10] sm:$0xff]
        %v516 = vld [vmem:[%s7 + $0x18] sm:$0xff]
        %v517 = vld [vmem:[%s8] sm:$0x3]
        %v522 = vunpack.c.l.b16 %v513
        %v523 = vunpack.c.h.b16 %v513
        %v524 = vunpack.c.l.b16 %v514
        %v525 = vunpack.c.h.b16 %v514
        %v526 = vunpack.c.l.b16 %v515
        %v527 = vunpack.c.h.b16 %v515
        %v528 = vunpack.c.l.b16 %v516
        %v529 = vunpack.c.h.b16 %v516
        %v530 = vpack.c.b16 %v524, %v522
        %v531 = vpack.c.b16 %v525, %v523
        %v532 = vpack.c.b16 %v528, %v526
        %v533 = vpack.c.b16 %v529, %v527
        %v539 = vperm.slane %v517, 0
        %v540 = vperm.slane %v517, 1
        %vm543 = vcmask 261120
        %v545 = vsel %vm543, %v512, 0
        %547 = vmatpush.bf16.msra.mxu0 0
        %548 = vmatpush.bf16.msra.mxu0 0
        %549 = vmatpush.bf16.msra.mxu0 0
        %550 = vmatpush.bf16.msra.mxu0 0
        %551 = vmatpush.bf16.msra.mxu0 0
        %552 = vmatpush.bf16.msra.mxu0 0
        %553 = vmatpush.bf16.msra.mxu0 %v532
        %554 = vmatpush.bf16.msra.mxu0 %v530
        %555 = vmatmul.bf16.gmra.mxu0 %v545
        %v556 = vpop.f32.mrf.mxu0
        %v557 = vadd.f32 %v539, %v556
        %v558 = vpop.f32.mrf.mxu0
        %559 = vdwg.mxu0
        %560 = vmatpush.bf16.msra.mxu0 0
        %561 = vmatpush.bf16.msra.mxu0 0
        %562 = vmatpush.bf16.msra.mxu0 0
        %563 = vmatpush.bf16.msra.mxu0 0
        %564 = vmatpush.bf16.msra.mxu0 0
        %565 = vmatpush.bf16.msra.mxu0 0
        %566 = vmatpush.bf16.msra.mxu0 %v533
        %567 = vmatpush.bf16.msra.mxu0 %v531
        %568 = vmatmul.bf16.gmra.mxu0 %v545
        %v569 = vpop.f32.mrf.mxu0
        %v570 = vadd.f32 %v540, %v569
        %v571 = vpop.f32.mrf.mxu0
        %572 = vdwg.mxu0
        %v573 = vmax.f32 %v557, %v570
        %v574 = vsub.f32 %v557, %v573
        %v575 = vmul.f32 %v574, 1.442695
        %v576 = vpow.pop %v575
        %v577 = vsub.f32 %v570, %v573
        %v578 = vmul.f32 %v577, 1.442695
        %v579 = vpow.pop %v578
        %v580 = vadd.f32 %v576, %v579
        %v581 = vrcp.pop %v580
        %v582 = vmul.f32 %v576, %v581
        %v583 = vperm.slane %v582, 0
        %v584 = vmul.f32 %v583, %v416
        %v585 = vmul.f32 %v583, %v418
        %v586 = vadd.f32 %v584, 0.0
        %v587 = vadd.f32 %v585, 0.0
        %v588 = vmul.f32 %v579, %v581
        %v589 = vperm.slane %v588, 0
        %v590 = vmul.f32 %v589, %v417
        %v591 = vmul.f32 %v589, %v419
        %v592 = vadd.f32 %v586, %v590
        %v593 = vadd.f32 %v587, %v591
        %594 = vst [vmem:[%s325] sm:$0xff] %v592
        %595 = vst [vmem:[%s325 + $0x8] sm:$0xff] %v593
        %s596 = sand.u32 %s225, 1
        %s597 = scalar_lea.sflag [#allocation3], %s596
        %s598 = sand.u32 %s225, 1
        %s599 = smul.addr %s598, 16
        %s600 = scalar_lea.vmem [#allocation2], %s599
        // Predicated region
        $region57: #{tpu_custom_call.1} parent=55 // pred_check
          %p601 = pneg %p235
        $region58: #{tpu_custom_call.1} parent=55 // pred_check_branch
          %603 = sbr.rel (%p601) target = $region60
        $region59: #{tpu_custom_call.1} parent=55 // pred_region
          %605 = vsyncadd %s597, 0
          %s606 = smul.addr %s23, 2
          %s607 = smul.addr %s606, 8
          %s608 = scalar_lea.hbm %s9, %s607
          %s609 = sshll.u32 %s600, 4
          %s610 = int_to_ptr.vmem [resolvable:$true] %s609
          %s611 = sshll.u32 %s608, 4
          %s612 = int_to_ptr.hbm [resolvable:$true] %s611
          %617 = dma.vmem_to_hbm [thread:$0]  %s610, 256, %s612, %s597, 128, 128, 8
        $region60: #{tpu_custom_call.1} parent=55 // pred_fallthru
          _
      $region56: #{tpu_custom_call.1} parent=5 // pred_fallthru
        _
      %p618 = scmp.le.s32.totalorder 2, %s18
      // Predicated region
      $region61: #{tpu_custom_call.1} parent=5 // pred_check
        %p619 = pneg %p618
      $region62: #{tpu_custom_call.1} parent=5 // pred_check_branch
        %621 = sbr.rel (%p619) target = $region64
      $region63: #{tpu_custom_call.1} parent=5 // pred_region
        %s622 = ssub.s32 %s18, 2
        // Predicated region
        $region65: #{tpu_custom_call.1} parent=63 // pred_check
          %p623 = pneg %p241
        $region66: #{tpu_custom_call.1} parent=63 // pred_check_branch
          %625 = sbr.rel (%p623) target = $region68
        $region67: #{tpu_custom_call.1} parent=63 // pred_region
          %s626 = sand.u32 %s226, 1
          %s627 = scalar_lea.sflag [#allocation3], %s626
          %s628 = sand.u32 %s226, 1
          %s629 = smul.addr %s628, 16
          %s630 = scalar_lea.vmem [#allocation2], %s629
          %632 = dma.done %s627, 256
        $region68: #{tpu_custom_call.1} parent=63 // pred_fallthru
          _
      $region64: #{tpu_custom_call.1} parent=5 // pred_fallthru
        _
    $region6: #{tpu_custom_call.1} parent=1 // loop_footer
      %s22 = sadd.s32 1, %s18
    $region7: #{tpu_custom_call.1} parent=1 // loop_footer_branch
      %17 = sbr.rel target = $region3
    $region8: #{tpu_custom_call.1} parent=1 // loop_exit
      _
    %633 = vsyncpa [#allocation3], 1
    %s634 = scalar_lea.sflag [#allocation3], 1
    %635 = vsyncpa %s634, 1

</llo_original>
